<compile_context>
chip_gen: v5e
topology: v5e:2x2
jax: 0.10.0
libtpu: 0.0.40
codegen_flags: <defaults>
</compile_context>

<pallas_src>
import jax
import jax.numpy as jnp
from jax.experimental import pallas as pl
from jax.experimental.pallas import tpu as pltpu


# --------------------------------------------------------------------------
# Kernels
# --------------------------------------------------------------------------

def _critic_kernel_modern(sa_ref, w1_ref, w2_ref, w3_ref, p_ref, out_ref):
    """v6e/v7x path: bf16 epilogues, fc3 on the MXU.

    sa:(SA,TB) bf16  w1:(16,SA) bf16  w2:(16,16) bf16  w3:(1,16) bf16
    p:(16,4) f32 = [b1 | b2 | w3col(unused here) | b3]   out:(1,TB) f32
    """
    p = p_ref[...]
    b1 = p[:, 0:1].astype(jnp.bfloat16)
    b2 = p[:, 1:2].astype(jnp.bfloat16)
    b3 = p[0:1, 3:4]                                   # f32 (1,1)

    # fc1: bf16 MXU, f32 accumulate; bias+relu in bf16 (bf16 VALU on v6e/v7x).
    h1 = jnp.dot(w1_ref[...], sa_ref[...], preferred_element_type=jnp.float32)
    h1 = jnp.maximum(h1.astype(jnp.bfloat16) + b1, 0)          # (16,TB) bf16

    # fc2: same structure; no separate astype pack pass needed.
    h2 = jnp.dot(w2_ref[...], h1, preferred_element_type=jnp.float32)
    h2 = jnp.maximum(h2.astype(jnp.bfloat16) + b2, 0)          # (16,TB) bf16

    # fc3 (16 -> 1) on the (otherwise idle) MXU; final bias add in f32.
    q = jnp.dot(w3_ref[...], h2, preferred_element_type=jnp.float32)  # (1,TB)
    out_ref[...] = (q + b3).astype(out_ref.dtype)


def _critic_kernel_legacy(sa_ref, w1_ref, w2_ref, p_ref, out_ref):
    """v5e-and-older path: f32 epilogues (no bf16 VPU), fc3 on VPU+XLU.

    sa:(SA,TB) bf16  w1:(16,SA) bf16  w2:(16,16) bf16
    p:(16,4) f32 = [b1 | b2 | w3col | b3]   out:(1,TB) f32
    """
    p = p_ref[...]
    b1, b2, w3c, b3 = p[:, 0:1], p[:, 1:2], p[:, 2:3], p[0:1, 3:4]

    h1 = jnp.dot(w1_ref[...], sa_ref[...], preferred_element_type=jnp.float32)
    h1 = jnp.maximum(h1 + b1, 0.0)                              # (16,TB) f32

    h2 = jnp.dot(w2_ref[...], h1.astype(w2_ref.dtype),
                 preferred_element_type=jnp.float32)
    h2 = jnp.maximum(h2 + b2, 0.0)                              # (16,TB) f32

    q = jnp.sum(h2 * w3c, axis=0, keepdims=True) + b3           # (1,TB)
    out_ref[...] = q.astype(out_ref.dtype)


# --------------------------------------------------------------------------
# Wrapper
# --------------------------------------------------------------------------

def _round_up(x, m):
    return (x + m - 1) // m * m


def _has_bf16_vpu():
    """True on v6e/v7x-class chips (bf16 VALU); False on v5e and older."""
    try:
        kind = jax.devices()[0].device_kind.lower()
    except Exception:  # pragma: no cover - fall back to the modern path
        return True
    for tag in ("v2", "v3", "v4", "v5"):
        if tag in kind:
            return False
    return True


def critic_forward(state, action, params, *, tb_max=32768, sa_fb=None):
    """state: (B, S) f32, action: (B, A) f32  ->  q: (B, 1) f32.

    `sa_fb` (optional): pre-packed (S+A, B) bf16 activations in
    feature-on-sublane / batch-on-lane layout; skips the wrapper layout pass
    entirely (best case per perf review: producer emits this layout).
    """
    assert tb_max % 128 == 0 and tb_max >= 256
    B, S = state.shape
    A = action.shape[1]
    SA = S + A

    # ---- batch tiling -----------------------------------------------------
    # Small batches: single full-array block.  Large batches: >= 2 tiles
    # (multiple of 128, capped at tb_max) so the "parallel" grid axis can
    # shard across both TensorCores on v7x while keeping per-tile VMEM small.
    single_tile_cap = min(tb_max, 1024)
    if B <= single_tile_cap:
        TB, B_pad, n_tiles = B, B, 1
    else:
        n_tiles = max(2, pl.cdiv(B, tb_max))
        TB = min(tb_max, _round_up(pl.cdiv(B, n_tiles), 128))
        B_pad = n_tiles * TB

    # ---- single fused layout pass (concat + bf16 cast + transpose + pad) --
    if sa_fb is None:
        sa = jnp.concatenate([state, action], axis=1).astype(jnp.bfloat16).T
    else:
        assert sa_fb.shape == (SA, B)
        sa = sa_fb.astype(jnp.bfloat16)
    if B_pad != B:
        sa = jnp.pad(sa, ((0, 0), (0, B_pad - B)))              # (SA, B_pad)

    w1, w2, w3r, p = params["w1"], params["w2"], params["w3_row"], params["p"]

    act_spec = pl.BlockSpec((SA, TB), lambda i: (0, i))
    fixed = lambda a: pl.BlockSpec(a.shape, lambda i: (0, 0))
    out_spec = pl.BlockSpec((1, TB), lambda i: (0, i))

    compiler_params = pltpu.CompilerParams(
        dimension_semantics=("parallel",),
        vmem_limit_bytes=48 * 1024 * 1024,   # <= physical VMEM on v5e/v6e/v7x
    )

    if _has_bf16_vpu():
        kernel = _critic_kernel_modern
        operands = (sa, w1, w2, w3r, p)
        in_specs = [act_spec, fixed(w1), fixed(w2), fixed(w3r), fixed(p)]
    else:
        kernel = _critic_kernel_legacy
        operands = (sa, w1, w2, p)
        in_specs = [act_spec, fixed(w1), fixed(w2), fixed(p)]

    q_row = pl.pallas_call(
        kernel,
        out_shape=jax.ShapeDtypeStruct((1, B_pad), jnp.float32),
        grid=(n_tiles,),
        in_specs=in_specs,
        out_specs=out_spec,
        compiler_params=compiler_params,
    )(*operands)

    # Padded batch columns hold garbage; slice them off, back to (B, 1).
    return q_row[:, :B].T


# --------------------------------------------------------------------------
# Params + reference
# --------------------------------------------------------------------------

def init_critic_params(key, state_dim, action_dim):
    """Synthetic init matching nn.Linear fan-in; stored in kernel layout."""
    in1 = state_dim + action_dim
    ks = jax.random.split(key, 6)

    def unif(k, shape, fan_in):
        bound = 1.0 / jnp.sqrt(jnp.float32(fan_in))
        return jax.random.uniform(k, shape, jnp.float32, -bound, bound)

    w1 = unif(ks[0], (16, in1), in1)          # PyTorch (out, in) layout
    b1 = unif(ks[1], (16,), in1)
    w2 = unif(ks[2], (16, 16), 16)
    b2 = unif(ks[3], (16,), 16)
    w3 = unif(ks[4], (1, 16), 16)
    b3 = unif(ks[5], (1,), 16)

    # One f32 slab for all tiny per-feature params: [b1 | b2 | w3col | b3].
    p = jnp.stack([b1, b2, w3[0], jnp.full((16,), b3[0])], axis=1)

    return {
        "w1": w1.astype(jnp.bfloat16),        # (16, S+A)
        "w2": w2.astype(jnp.bfloat16),        # (16, 16)
        "w3_row": w3.astype(jnp.bfloat16),    # (1, 16)   (MXU fc3 path)
        "p": p.astype(jnp.float32),           # (16, 4)
    }


def critic_reference(state, action, params, *, bf16_epilogue):
    """Pure-JAX reference mirroring the selected kernel path's numerics."""
    hp = jax.lax.Precision.HIGHEST
    f32, bf16 = jnp.float32, jnp.bfloat16
    sa = jnp.concatenate([state, action], 1).astype(bf16).astype(f32)
    w1 = params["w1"].astype(f32)
    w2 = params["w2"].astype(f32)
    p = params["p"]
    b1, b2, w3c, b3 = p[:, 0], p[:, 1], p[:, 2], p[0, 3]

    h1 = jnp.dot(sa, w1.T, precision=hp)
    if bf16_epilogue:
        h1 = jnp.maximum(h1.astype(bf16) + b1.astype(bf16), 0).astype(f32)
        h2 = jnp.dot(h1, w2.T, precision=hp)
        h2 = jnp.maximum(h2.astype(bf16) + b2.astype(bf16), 0).astype(f32)
        w3 = params["w3_row"].astype(f32)[0]
        q = jnp.dot(h2, w3, precision=hp) + b3
    else:
        h1 = jnp.maximum(h1 + b1, 0.0).astype(bf16).astype(f32)
        h2 = jnp.dot(h1, w2.T, precision=hp)
        h2 = jnp.maximum(h2 + b2, 0.0)
        q = jnp.dot(h2, w3c, precision=hp) + b3
    return q[:, None]


# --------------------------------------------------------------------------
# Self-test
# --------------------------------------------------------------------------

if __name__ == "__main__":
    key = jax.random.PRNGKey(0)
    k_p, k_s, k_a, k_s2, k_a2 = jax.random.split(key, 5)

    state_dim, action_dim = 8, 4
    params = init_critic_params(k_p, state_dim, action_dim)
    use_bf16 = _has_bf16_vpu()

    # Small single-tile case (matches the module's tiny MLP sizes).
    B1 = 8
    state = jax.random.normal(k_s, (B1, state_dim), jnp.float32)
    action = jax.random.normal(k_a, (B1, action_dim), jnp.float32)
    q = jax.block_until_ready(critic_forward(state, action, params))
    q_ref = critic_reference(state, action, params, bf16_epilogue=use_bf16)
    assert q.shape == (B1, 1)
    assert jnp.allclose(q, q_ref, atol=2e-3, rtol=2e-3), \
        float(jnp.max(jnp.abs(q - q_ref)))

    # Multi-tile path (grid > 1, lane padding, "parallel" megacore axis).
    B2 = 2000
    state2 = jax.random.normal(k_s2, (B2, state_dim), jnp.float32)
    action2 = jax.random.normal(k_a2, (B2, action_dim), jnp.float32)
    q2 = jax.block_until_ready(
        critic_forward(state2, action2, params, tb_max=512))
    q2_ref = critic_reference(state2, action2, params, bf16_epilogue=use_bf16)
    assert q2.shape == (B2, 1)
    assert jnp.allclose(q2, q2_ref, atol=2e-3, rtol=2e-3), \
        float(jnp.max(jnp.abs(q2 - q2_ref)))

    print("KERNEL_OK")
</pallas_src>

<mosaic_0001>
module attributes {stable_mosaic.version = 11 : i64} {
  func.func @_critic_kernel_modern(%arg0: i32, %arg1: memref<12x8xbf16, #tpu.memory_space<vmem>>, %arg2: memref<16x12xbf16, #tpu.memory_space<vmem>>, %arg3: memref<16x16xbf16, #tpu.memory_space<vmem>>, %arg4: memref<1x16xbf16, #tpu.memory_space<vmem>>, %arg5: memref<16x4xf32, #tpu.memory_space<vmem>>, %arg6: memref<1x8xf32, #tpu.memory_space<vmem>>) attributes {dimension_semantics = [#tpu.dimension_semantics<parallel>], iteration_bounds = array<i64: 1>, scalar_prefetch = 0 : i64, scratch_operands = 0 : i64, tpu.core_type = #tpu.core_type<tc>, window_params = [{transform_indices = @transform_0, window_bounds = array<i64: 12, 8>}, {pipeline_mode = #tpu.pipeline_mode<synchronous>, transform_indices = @transform_1, window_bounds = array<i64: 16, 12>}, {pipeline_mode = #tpu.pipeline_mode<synchronous>, transform_indices = @transform_2, window_bounds = array<i64: 16, 16>}, {pipeline_mode = #tpu.pipeline_mode<synchronous>, transform_indices = @transform_3, window_bounds = array<i64: 1, 16>}, {pipeline_mode = #tpu.pipeline_mode<synchronous>, transform_indices = @transform_4, window_bounds = array<i64: 16, 4>}, {transform_indices = @transform_5, window_bounds = array<i64: 1, 8>}]} {
    %c0 = arith.constant 0 : index
    %c0_0 = arith.constant 0 : index
    %0 = vector.load %arg5[%c0, %c0_0] : memref<16x4xf32, #tpu.memory_space<vmem>>, vector<16x4xf32>
    %1 = vector.extract_strided_slice %0 {offsets = [0, 0], sizes = [16, 1], strides = [1, 1]} : vector<16x4xf32> to vector<16x1xf32>
    %2 = arith.truncf %1 : vector<16x1xf32> to vector<16x1xbf16>
    %3 = vector.extract_strided_slice %0 {offsets = [0, 1], sizes = [16, 1], strides = [1, 1]} : vector<16x4xf32> to vector<16x1xf32>
    %4 = arith.truncf %3 : vector<16x1xf32> to vector<16x1xbf16>
    %5 = vector.extract_strided_slice %0 {offsets = [0, 3], sizes = [1, 1], strides = [1, 1]} : vector<16x4xf32> to vector<1x1xf32>
    %c0_1 = arith.constant 0 : index
    %c0_2 = arith.constant 0 : index
    %6 = vector.load %arg2[%c0_1, %c0_2] : memref<16x12xbf16, #tpu.memory_space<vmem>>, vector<16x12xbf16>
    %c0_3 = arith.constant 0 : index
    %c0_4 = arith.constant 0 : index
    %7 = vector.load %arg1[%c0_3, %c0_4] : memref<12x8xbf16, #tpu.memory_space<vmem>>, vector<12x8xbf16>
    %cst = arith.constant dense<0.000000e+00> : vector<16x8xf32>
    %8 = tpu.matmul %6, %7, %cst {dimension_numbers = #tpu.dot_dimension_numbers<[1], [0], [0], [1], [0, 0, 1, 1], [], []>} : vector<16x12xbf16>, vector<12x8xbf16>, vector<16x8xf32> -> vector<16x8xf32>
    %9 = arith.truncf %8 : vector<16x8xf32> to vector<16x8xbf16>
    %10 = vector.broadcast %2 : vector<16x1xbf16> to vector<16x8xbf16>
    %11 = arith.addf %9, %10 : vector<16x8xbf16>
    %cst_5 = arith.constant 0.000000e+00 : bf16
    %12 = vector.broadcast %cst_5 : bf16 to vector<16x8xbf16>
    %13 = arith.maximumf %11, %12 : vector<16x8xbf16>
    %c0_6 = arith.constant 0 : index
    %c0_7 = arith.constant 0 : index
    %14 = vector.load %arg3[%c0_6, %c0_7] : memref<16x16xbf16, #tpu.memory_space<vmem>>, vector<16x16xbf16>
    %cst_8 = arith.constant dense<0.000000e+00> : vector<16x8xf32>
    %15 = tpu.matmul %14, %13, %cst_8 {dimension_numbers = #tpu.dot_dimension_numbers<[1], [0], [0], [1], [0, 0, 1, 1], [], []>} : vector<16x16xbf16>, vector<16x8xbf16>, vector<16x8xf32> -> vector<16x8xf32>
    %16 = arith.truncf %15 : vector<16x8xf32> to vector<16x8xbf16>
    %17 = vector.broadcast %4 : vector<16x1xbf16> to vector<16x8xbf16>
    %18 = arith.addf %16, %17 : vector<16x8xbf16>
    %cst_9 = arith.constant 0.000000e+00 : bf16
    %19 = vector.broadcast %cst_9 : bf16 to vector<16x8xbf16>
    %20 = arith.maximumf %18, %19 : vector<16x8xbf16>
    %c0_10 = arith.constant 0 : index
    %c0_11 = arith.constant 0 : index
    %21 = vector.load %arg4[%c0_10, %c0_11] : memref<1x16xbf16, #tpu.memory_space<vmem>>, vector<1x16xbf16>
    %cst_12 = arith.constant dense<0.000000e+00> : vector<1x8xf32>
    %22 = tpu.matmul %21, %20, %cst_12 {dimension_numbers = #tpu.dot_dimension_numbers<[1], [0], [0], [1], [0, 0, 1, 1], [], []>} : vector<1x16xbf16>, vector<16x8xbf16>, vector<1x8xf32> -> vector<1x8xf32>
    %23 = vector.broadcast %5 : vector<1x1xf32> to vector<1x8xf32>
    %24 = arith.addf %22, %23 : vector<1x8xf32>
    %c0_13 = arith.constant 0 : index
    %c0_14 = arith.constant 0 : index
    %25 = vector.load %arg6[%c0_13, %c0_14] : memref<1x8xf32, #tpu.memory_space<vmem>>, vector<1x8xf32>
    tpu.vector_store %arg6[%c0_13, %c0_14], %24 {strides = array<i32>} : memref<1x8xf32, #tpu.memory_space<vmem>>, vector<1x8xf32>,
    return
  }
  func.func @transform_0(%arg0: i32) -> (i32, i32) {
    %c0_i32 = arith.constant 0 : i32
    %c0_i32_0 = arith.constant 0 : i32
    return %c0_i32, %arg0 : i32, i32
  }
  func.func @transform_1(%arg0: i32) -> (i32, i32) {
    %c0_i32 = arith.constant 0 : i32
    %c0_i32_0 = arith.constant 0 : i32
    %c0_i32_1 = arith.constant 0 : i32
    return %c0_i32, %c0_i32_0 : i32, i32
  }
  func.func @transform_2(%arg0: i32) -> (i32, i32) {
    %c0_i32 = arith.constant 0 : i32
    %c0_i32_0 = arith.constant 0 : i32
    %c0_i32_1 = arith.constant 0 : i32
    return %c0_i32, %c0_i32_0 : i32, i32
  }
  func.func @transform_3(%arg0: i32) -> (i32, i32) {
    %c0_i32 = arith.constant 0 : i32
    %c0_i32_0 = arith.constant 0 : i32
    %c0_i32_1 = arith.constant 0 : i32
    return %c0_i32, %c0_i32_0 : i32, i32
  }
  func.func @transform_4(%arg0: i32) -> (i32, i32) {
    %c0_i32 = arith.constant 0 : i32
    %c0_i32_0 = arith.constant 0 : i32
    %c0_i32_1 = arith.constant 0 : i32
    return %c0_i32, %c0_i32_0 : i32, i32
  }
  func.func @transform_5(%arg0: i32) -> (i32, i32) {
    %c0_i32 = arith.constant 0 : i32
    %c0_i32_0 = arith.constant 0 : i32
    return %c0_i32, %arg0 : i32, i32
  }
}

</mosaic_0001>

<llo_original>
// kernel: tpu_custom_call.1
$region0: #{tpu_custom_call.1}
  #allocation0 [shape = 'u32[]', space=smem, size = 0x4, offset = 0x4, fixed_abs, tag = 'smem constant byte address 0x4 - core index']
  #allocation1 [shape = 'u32[72,128]{1,0:T(1,128)}', space=vmem, size = 0x9000, scoped, tag = 'internal scratch']
  %s0 = inlined_call_operand.vmem [shape: bf16[12,8], index: 0, kind: input, shape index: {}]
  %s1 = inlined_call_operand.vmem [shape: bf16[16,12], index: 1, kind: input, shape index: {}]
  %s2 = inlined_call_operand.vmem [shape: bf16[16,16], index: 2, kind: input, shape index: {}]
  %s3 = inlined_call_operand.vmem [shape: bf16[1,16], index: 3, kind: input, shape index: {}]
  %s4 = inlined_call_operand.vmem [shape: f32[16,4], index: 4, kind: input, shape index: {}]
  %s5 = inlined_call_operand.hbm [shape: f32[1,8], index: 5, kind: output, shape index: {}]
  %s6 = sld [smem:[#allocation0]]
  $region30: #{tpu_custom_call.1} parent=0
    _
  %s8 = ssub.s32 1, %s6
  %s9 = scalar_select 0, %s8, %s6
  $region1: #{tpu_custom_call.1} parent=0
    #allocation2 [shape = 'u8[512]{0}', space=vmem, size = 0x400, scoped, tag = 'output window, operand 0, single buffered']
    #allocation3 [shape = 's32[1]{0}', space=sflag, size = 0x4, scoped, tag = 'scoped memory for tpu_custom_call.1']
    %10 = vsyncpa [#allocation3], 0
    // Predicated region
    $region2: #{tpu_custom_call.1} parent=1 // pred_check
      _
    $region3: #{tpu_custom_call.1} parent=1 // pred_check_branch
      %12 = sbr.rel (0) target = $region5
    $region4: #{tpu_custom_call.1} parent=1 // pred_region
      _
    $region5: #{tpu_custom_call.1} parent=1 // pred_fallthru
      _
    // Predicated region
    $region6: #{tpu_custom_call.1} parent=1 // pred_check
      _
    $region7: #{tpu_custom_call.1} parent=1 // pred_check_branch
      %14 = sbr.rel (0) target = $region9
    $region8: #{tpu_custom_call.1} parent=1 // pred_region
      _
    $region9: #{tpu_custom_call.1} parent=1 // pred_fallthru
      _
    // Predicated region
    $region10: #{tpu_custom_call.1} parent=1 // pred_check
      _
    $region11: #{tpu_custom_call.1} parent=1 // pred_check_branch
      %16 = sbr.rel (0) target = $region13
    $region12: #{tpu_custom_call.1} parent=1 // pred_region
      _
    $region13: #{tpu_custom_call.1} parent=1 // pred_fallthru
      _
    // Predicated region
    $region14: #{tpu_custom_call.1} parent=1 // pred_check
      _
    $region15: #{tpu_custom_call.1} parent=1 // pred_check_branch
      %18 = sbr.rel (0) target = $region17
    $region16: #{tpu_custom_call.1} parent=1 // pred_region
      _
    $region17: #{tpu_custom_call.1} parent=1 // pred_fallthru
      _
    // Predicated region
    $region18: #{tpu_custom_call.1} parent=1 // pred_check
      _
    $region19: #{tpu_custom_call.1} parent=1 // pred_check_branch
      %20 = sbr.rel (0) target = $region21
    $region20: #{tpu_custom_call.1} parent=1 // pred_region
      _
    $region21: #{tpu_custom_call.1} parent=1 // pred_fallthru
      _
    %v22 = vld [vmem:[%s4] sm:$0xff]
    %v23 = vld [vmem:[%s4 + $0x8] sm:$0xff]
    %v24 = vpack.c.bf16 %v22, %v22
    %v25 = vpack.c.bf16 %v23, %v23
    %v26 = vld [vmem:[%s1] sm:$0xf]
    %v27 = vld [vmem:[%s1 + $0x4] sm:$0xf]
    %v28 = vld [vmem:[%s0] sm:$0xf]
    %v29 = vld [vmem:[%s0 + $0x4] sm:$0x3]
    %v32 = vunpack.c.l.b16 %v26
    %v33 = vunpack.c.l.b16 %v27
    %v34 = vpack.c.b16 %v33, %v32
    %v37 = vunpack.c.l.b16 %v28
    %v38 = vunpack.c.l.b16 %v29
    %v39 = vpack.c.b16 %v38, %v37
    %vm40 = vcmask 97280
    %v42 = vsel %vm40, %v34, 0
    %vm44 = vcmask 1045504
    %v46 = vsel %vm44, %v39, 0
    %48 = vmatpush.bf16.msra.mxu0 0
    %49 = vmatpush.bf16.msra.mxu0 0
    %50 = vmatpush.bf16.msra.mxu0 0
    %51 = vmatpush.bf16.msra.mxu0 0
    %52 = vmatpush.bf16.msra.mxu0 0
    %53 = vmatpush.bf16.msra.mxu0 0
    %54 = vmatpush.bf16.msra.mxu0 0
    %55 = vmatpush.bf16.msra.mxu0 %v46
    %56 = vmatmul.bf16.gmra.mxu0 %v42
    %v57 = vpop.f32.mrf.mxu0
    %v58 = vadd.f32 0.0, %v57
    %v59 = vpop.f32.mrf.mxu0
    %v60 = vadd.f32 0.0, %v59
    %61 = vdwg.mxu0
    %v62 = vpack.c.bf16 %v58, %v58
    %v63 = vpack.c.bf16 %v60, %v60
    %65 = vset.pattern.permute.xlu0 0
    %66 = vperm.xlu0 %65, %v24
    %v67 = vpop.permute.xlu0 %66
    %v70 = vunpack.c.l.s4 839922192
    %v71 = vunpack.c.0.s8 %v70
    %v72 = vperm.slane %v67, %v71
    %74 = vset.pattern.permute.xlu0 0
    %75 = vperm.xlu0 %74, %v25
    %v76 = vpop.permute.xlu0 %75
    %v79 = vunpack.c.l.s4 839922192
    %v80 = vunpack.c.0.s8 %v79
    %v81 = vperm.slane %v76, %v80
    %v82 = vunpack.c.l.bf16 %v62
    %v83 = vunpack.c.l.bf16 %v63
    %v84 = vunpack.c.l.bf16 %v72
    %v85 = vunpack.c.l.bf16 %v81
    %v86 = vadd.f32 %v82, %v84
    %v87 = vadd.f32 %v83, %v85
    %v88 = vpack.c.bf16 %v86, %v86
    %v89 = vpack.c.bf16 %v87, %v87
    %v90 = vunpack.c.l.bf16 %v88
    %v91 = vunpack.c.l.bf16 %v89
    %v92 = vmax.f32 %v90, 0.0
    %v93 = vmax.f32 %v91, 0.0
    %v94 = vpack.c.bf16 %v93, %v92
    %v95 = vld [vmem:[%s2] sm:$0xf]
    %v96 = vld [vmem:[%s2 + $0x4] sm:$0xf]
    %v99 = vunpack.c.l.b16 %v95
    %v100 = vunpack.c.l.b16 %v96
    %v101 = vpack.c.b16 %v100, %v99
    %vm102 = vcmask 130048
    %v104 = vsel %vm102, %v101, 0
    %106 = vmatpush.bf16.msra.mxu0 0
    %107 = vmatpush.bf16.msra.mxu0 0
    %108 = vmatpush.bf16.msra.mxu0 0
    %109 = vmatpush.bf16.msra.mxu0 0
    %110 = vmatpush.bf16.msra.mxu0 0
    %111 = vmatpush.bf16.msra.mxu0 0
    %112 = vmatpush.bf16.msra.mxu0 0
    %113 = vmatpush.bf16.msra.mxu0 %v94
    %114 = vmatmul.bf16.gmra.mxu0 %v104
    %v115 = vpop.f32.mrf.mxu0
    %v116 = vadd.f32 0.0, %v115
    %v117 = vpop.f32.mrf.mxu0
    %v118 = vadd.f32 0.0, %v117
    %119 = vdwg.mxu0
    %v120 = vpack.c.bf16 %v116, %v116
    %v121 = vpack.c.bf16 %v118, %v118
    %122 = vset.pattern.permute.xlu0 1
    %123 = vperm.xlu0 %122, %v24
    %v124 = vpop.permute.xlu0 %123
    %v127 = vunpack.c.l.s4 839922192
    %v128 = vunpack.c.0.s8 %v127
    %v129 = vperm.slane %v124, %v128
    %130 = vset.pattern.permute.xlu0 1
    %131 = vperm.xlu0 %130, %v25
    %v132 = vpop.permute.xlu0 %131
    %v135 = vunpack.c.l.s4 839922192
    %v136 = vunpack.c.0.s8 %v135
    %v137 = vperm.slane %v132, %v136
    %v138 = vunpack.c.l.bf16 %v120
    %v139 = vunpack.c.l.bf16 %v121
    %v140 = vunpack.c.l.bf16 %v129
    %v141 = vunpack.c.l.bf16 %v137
    %v142 = vadd.f32 %v138, %v140
    %v143 = vadd.f32 %v139, %v141
    %v144 = vpack.c.bf16 %v142, %v142
    %v145 = vpack.c.bf16 %v143, %v143
    %v146 = vunpack.c.l.bf16 %v144
    %v147 = vunpack.c.l.bf16 %v145
    %v148 = vmax.f32 %v146, 0.0
    %v149 = vmax.f32 %v147, 0.0
    %v150 = vpack.c.bf16 %v149, %v148
    %v151 = vld [vmem:[%s3] sm:$0x1]
    %153 = vset.pattern.permute.xlu0 3
    %154 = vperm.xlu0 %153, %v22
    %v155 = vpop.permute.xlu0 %154
    %v158 = vsel %vm102, %v151, 0
    %160 = vmatpush.bf16.msra.mxu0 0
    %161 = vmatpush.bf16.msra.mxu0 0
    %162 = vmatpush.bf16.msra.mxu0 0
    %163 = vmatpush.bf16.msra.mxu0 0
    %164 = vmatpush.bf16.msra.mxu0 0
    %165 = vmatpush.bf16.msra.mxu0 0
    %166 = vmatpush.bf16.msra.mxu0 0
    %167 = vmatpush.bf16.msra.mxu0 %v150
    %168 = vmatmul.bf16.gmra.mxu0 %v158
    %v169 = vpop.f32.mrf.mxu0
    %v170 = vadd.f32 %v155, %v169
    %v171 = vpop.f32.mrf.mxu0
    %172 = vdwg.mxu0
    %vm173 = vcmask 57344
    %174 = vst.msk [vmem:[#allocation2] sm:$0x1] %vm173, %v170
    // Predicated region
    $region22: #{tpu_custom_call.1} parent=1 // pred_check
      _
    $region23: #{tpu_custom_call.1} parent=1 // pred_check_branch
      %176 = sbr.rel (0) target = $region25
    $region24: #{tpu_custom_call.1} parent=1 // pred_region
      %178 = vsyncadd [#allocation3], 0
      %s180 = sshll.u32 [#allocation2], 4
      %s181 = int_to_ptr.vmem [resolvable:$true] %s180
      %s182 = sshll.u32 %s5, 4
      %s183 = int_to_ptr.hbm [resolvable:$true] %s182
      %185 = dma.vmem_to_hbm [thread:$0]  %s181, 16, %s183, [#allocation3]
    $region25: #{tpu_custom_call.1} parent=1 // pred_fallthru
      _
    // Predicated region
    $region26: #{tpu_custom_call.1} parent=1 // pred_check
      _
    $region27: #{tpu_custom_call.1} parent=1 // pred_check_branch
      %187 = sbr.rel (0) target = $region29
    $region28: #{tpu_custom_call.1} parent=1 // pred_region
      %189 = dma.done [#allocation3], 16
    $region29: #{tpu_custom_call.1} parent=1 // pred_fallthru
      _
    %190 = vsyncpa [#allocation3], 1

</llo_original>
